<compile_context>
chip_gen: v5e
topology: v5e:2x2
jax: 0.10.0
libtpu: 0.0.40
codegen_flags: <defaults>
</compile_context>

<pallas_src>
import functools

import jax
import jax.numpy as jnp
from jax.experimental import pallas as pl
from jax.experimental.pallas import tpu as pltpu


def _mish_kernel(x_ref, o_ref, *, exact_recip: bool):
    x = x_ref[...].astype(jnp.float32)
    u = jnp.exp(-jnp.abs(x))            # u in (0, 1]  (EUP)
    a = 2.0 * u
    u2 = u * u
    pos = x >= 0.0
    num = jnp.where(pos, 1.0 + a, u2 + a)
    den = num + jnp.where(pos, 2.0 * u2, 2.0)   # den in [1, 5]
    if exact_recip:
        # Mem-bound f32 path: exact division is hidden under DMA slack and
        # gives better parity with the PyTorch reference.
        y = x * (num / den)
    else:
        # Narrow-dtype path: approx reciprocal rides the EUP slot for free.
        y = x * (num * pl.reciprocal(den, approx=True))
    o_ref[...] = y.astype(o_ref.dtype)


_LANE_CANDIDATES = (2048, 1024, 512, 256, 128)
# ~4 MiB per VMEM buffer; 2 in + 2 out double-buffered = 16 MiB live, which we
# cover explicitly with vmem_limit_bytes=32 MiB (safe on v5e/v6e/v7x physical).
_TARGET_BLOCK_BYTES = 4 * 1024 * 1024
_VMEM_LIMIT_BYTES = 32 * 1024 * 1024


def _mish_jnp(x):
    """Plain-JAX Mish for tiny tails (< 128 elements)."""
    xf = x.astype(jnp.float32)
    return (xf * jnp.tanh(jax.nn.softplus(xf))).astype(x.dtype)


def _round_up(v, m):
    return -(-v // m) * m


def _mish_flat_aligned(x_flat):
    """Mish on a 1-D array whose length is a multiple of 128."""
    n = x_flat.shape[0]
    dtype = x_flat.dtype
    itemsize = jnp.dtype(dtype).itemsize

    # Widest lane-dense last dim that divides n, preferring rows >= 8 so full
    # (8, 128) vreg tiles are used; worst case falls back to 128 lanes.
    lanes = None
    for cand in _LANE_CANDIDATES:
        if n % cand == 0 and (n // cand) >= 8:
            lanes = cand
            break
    if lanes is None:
        for cand in _LANE_CANDIDATES:
            if n % cand == 0:
                lanes = cand
                break
    rows = n // lanes
    x2d = x_flat.reshape(rows, lanes)

    # Block rows: ~4 MiB per buffer, multiple of 16 sublanes (bf16 packing),
    # clamped to the full extent for small inputs.
    target_rows = max(16, (_TARGET_BLOCK_BYTES // (lanes * itemsize)) // 16 * 16)
    block_rows = min(target_rows, rows)
    # v7x megacore: guarantee >= 2 grid programs whenever the tensor is
    # splittable so dimension_semantics=("parallel",) shards across both TCs.
    if rows >= 32:
        half_rows = _round_up(pl.cdiv(rows, 2), 16)
        block_rows = min(block_rows, half_rows)

    exact_recip = dtype == jnp.float32
    grid = (pl.cdiv(rows, block_rows),)
    cost = pl.CostEstimate(
        flops=12 * n,
        transcendentals=2 * n,
        bytes_accessed=2 * n * itemsize,
    )

    y2d = pl.pallas_call(
        functools.partial(_mish_kernel, exact_recip=exact_recip),
        out_shape=jax.ShapeDtypeStruct((rows, lanes), dtype),
        grid_spec=pltpu.PrefetchScalarGridSpec(
            num_scalar_prefetch=0,
            grid=grid,
            in_specs=[pl.BlockSpec((block_rows, lanes), lambda i: (i, 0))],
            out_specs=pl.BlockSpec((block_rows, lanes), lambda i: (i, 0)),
        ),
        compiler_params=pltpu.CompilerParams(
            dimension_semantics=("parallel",),
            vmem_limit_bytes=_VMEM_LIMIT_BYTES,
        ),
        cost_estimate=cost,
    )(x2d)
    return y2d.reshape(n)


def mish(x: jax.Array) -> jax.Array:
    """Elementwise Mish: x * tanh(softplus(x)). Accepts any shape/dtype."""
    orig_shape = x.shape
    n = x.size
    if n == 0:
        return x

    x_flat = jnp.ravel(x)
    n_main = (n // 128) * 128

    if n_main == n:
        # Common case: total size is a multiple of 128 -> single kernel call,
        # no extra HBM passes.
        return _mish_flat_aligned(x_flat).reshape(orig_shape)
    if n_main == 0:
        # Tiny tensor (< 128 elements): not worth a kernel launch.
        return _mish_jnp(x_flat).reshape(orig_shape)

    # Ragged size: kernel on the 128-aligned prefix, plain jnp on the short
    # tail (avoids the old full-array pad + slice HBM passes).
    y_main = _mish_flat_aligned(x_flat[:n_main])
    y_tail = _mish_jnp(x_flat[n_main:])
    return jnp.concatenate([y_main, y_tail]).reshape(orig_shape)


def _mish_ref(x):
    xf = x.astype(jnp.float32)
    return (xf * jnp.tanh(jax.nn.softplus(xf))).astype(x.dtype)


if __name__ == "__main__":
    key = jax.random.PRNGKey(0)

    # NCHW input, small shapes: batch=2, channels=4, spatial=16x16 (f32).
    x = jax.random.normal(key, (2, 4, 16, 16), dtype=jnp.float32) * 3.0
    y = jax.block_until_ready(mish(x))
    y_ref = _mish_ref(x)
    assert y.shape == x.shape and y.dtype == x.dtype
    # f32 path uses exact division -> tight tolerance.
    assert jnp.allclose(y, y_ref, atol=1e-4, rtol=1e-4), "f32 mismatch vs reference"

    # bf16 path: tiles stay narrow in HBM/VMEM, approx reciprocal in-register.
    xb = x.astype(jnp.bfloat16)
    yb = jax.block_until_ready(mish(xb))
    assert yb.dtype == jnp.bfloat16
    assert jnp.allclose(yb.astype(jnp.float32), _mish_ref(xb).astype(jnp.float32),
                        atol=2e-2, rtol=2e-2), "bf16 mismatch vs reference"

    # Odd size that exercises the aligned-prefix + jnp-tail path.
    xo = jax.random.normal(jax.random.PRNGKey(1), (3, 5, 7, 11), dtype=jnp.float32) * 3.0
    yo = jax.block_until_ready(mish(xo))
    assert jnp.allclose(yo, _mish_ref(xo), atol=1e-4, rtol=1e-4), "ragged-path mismatch"

    print("KERNEL_OK")
</pallas_src>

<mosaic_0001>
module attributes {stable_mosaic.version = 11 : i64} {
  func.func @_mish_kernel(%arg0: i32, %arg1: memref<8x256xf32, #tpu.memory_space<vmem>>, %arg2: memref<8x256xf32, #tpu.memory_space<vmem>>) attributes {dimension_semantics = [#tpu.dimension_semantics<parallel>], iteration_bounds = array<i64: 1>, scalar_prefetch = 0 : i64, scratch_operands = 0 : i64, tpu.core_type = #tpu.core_type<tc>, window_params = [{transform_indices = @transform_0, window_bounds = array<i64: 8, 256>}, {transform_indices = @transform_1, window_bounds = array<i64: 8, 256>}]} {
    %c0 = arith.constant 0 : index
    %c0_0 = arith.constant 0 : index
    %0 = vector.load %arg1[%c0, %c0_0] : memref<8x256xf32, #tpu.memory_space<vmem>>, vector<8x256xf32>
    %1 = math.absf %0 : vector<8x256xf32>
    %cst = arith.constant 0.000000e+00 : f32
    %2 = vector.broadcast %cst : f32 to vector<8x256xf32>
    %3 = arith.subf %2, %1 : vector<8x256xf32>
    %4 = math.exp %3 : vector<8x256xf32>
    %cst_1 = arith.constant 2.000000e+00 : f32
    %5 = vector.broadcast %cst_1 : f32 to vector<8x256xf32>
    %6 = arith.mulf %5, %4 : vector<8x256xf32>
    %7 = arith.mulf %4, %4 : vector<8x256xf32>
    %cst_2 = arith.constant 0.000000e+00 : f32
    %8 = vector.broadcast %cst_2 : f32 to vector<8x256xf32>
    %9 = arith.cmpf oge, %0, %8 : vector<8x256xf32>
    %cst_3 = arith.constant 1.000000e+00 : f32
    %10 = vector.broadcast %cst_3 : f32 to vector<8x256xf32>
    %11 = arith.addf %10, %6 : vector<8x256xf32>
    %12 = arith.addf %7, %6 : vector<8x256xf32>
    %13 = arith.select %9, %11, %12 : vector<8x256xi1>, vector<8x256xf32>
    %cst_4 = arith.constant 2.000000e+00 : f32
    %14 = vector.broadcast %cst_4 : f32 to vector<8x256xf32>
    %15 = arith.mulf %14, %7 : vector<8x256xf32>
    %cst_5 = arith.constant 2.000000e+00 : f32
    %16 = vector.broadcast %cst_5 : f32 to vector<8x256xf32>
    %17 = arith.select %9, %15, %16 : vector<8x256xi1>, vector<8x256xf32>
    %18 = arith.addf %13, %17 : vector<8x256xf32>
    %19 = arith.divf %13, %18 : vector<8x256xf32>
    %20 = arith.mulf %0, %19 : vector<8x256xf32>
    %c0_6 = arith.constant 0 : index
    %c0_7 = arith.constant 0 : index
    %21 = vector.load %arg2[%c0_6, %c0_7] : memref<8x256xf32, #tpu.memory_space<vmem>>, vector<8x256xf32>
    tpu.vector_store %arg2[%c0_6, %c0_7], %20 {strides = array<i32>} : memref<8x256xf32, #tpu.memory_space<vmem>>, vector<8x256xf32>,
    return
  }
  func.func @transform_0(%arg0: i32) -> (i32, i32) {
    %c0_i32 = arith.constant 0 : i32
    %c0_i32_0 = arith.constant 0 : i32
    return %arg0, %c0_i32 : i32, i32
  }
  func.func @transform_1(%arg0: i32) -> (i32, i32) {
    %c0_i32 = arith.constant 0 : i32
    %c0_i32_0 = arith.constant 0 : i32
    return %arg0, %c0_i32 : i32, i32
  }
}

</mosaic_0001>

<llo_original>
// kernel: tpu_custom_call.1
$region0: #{tpu_custom_call.1}
  #allocation0 [shape = 'u32[]', space=smem, size = 0x4, offset = 0x4, fixed_abs, tag = 'smem constant byte address 0x4 - core index']
  #allocation1 [shape = 'u32[72,128]{1,0:T(1,128)}', space=vmem, size = 0x9000, scoped, tag = 'internal scratch']
  %s0 = inlined_call_operand.hbm [shape: f32[8,256], index: 0, kind: input, shape index: {}]
  %s1 = inlined_call_operand.hbm [shape: f32[8,256], index: 1, kind: output, shape index: {}]
  %s2 = sld [smem:[#allocation0]]
  $region18: #{tpu_custom_call.1} parent=0
    _
  %s4 = ssub.s32 1, %s2
  %s5 = scalar_select 0, %s4, %s2
  $region1: #{tpu_custom_call.1} parent=0
    #allocation2 [shape = 'u8[8192]{0}', space=vmem, size = 0x2000, scoped, tag = 'input window, operand 0, single buffered']
    #allocation3 [shape = 's32[1]{0}', space=sflag, size = 0x4, scoped, tag = 'scoped memory for tpu_custom_call.1']
    #allocation4 [shape = 's32[1]{0}', space=sflag, size = 0x4, scoped, tag = 'scoped memory for tpu_custom_call.1']
    #allocation5 [shape = 'u8[8192]{0}', space=vmem, size = 0x2000, scoped, tag = 'output window, operand 0, single buffered']
    %6 = vsyncpa [#allocation3], 0
    %7 = vsyncpa [#allocation4], 0
    // Predicated region
    $region2: #{tpu_custom_call.1} parent=1 // pred_check
      _
    $region3: #{tpu_custom_call.1} parent=1 // pred_check_branch
      %9 = sbr.rel (0) target = $region5
    $region4: #{tpu_custom_call.1} parent=1 // pred_region
      %11 = vsyncadd [#allocation3], 0
      %s13 = sshll.u32 %s0, 4
      %s14 = int_to_ptr.hbm [resolvable:$true] %s13
      %s15 = sshll.u32 [#allocation2], 4
      %s16 = int_to_ptr.vmem [resolvable:$true] %s15
      %18 = dma.hbm_to_vmem [thread:$0]  %s14, 256, %s16, [#allocation3]
    $region5: #{tpu_custom_call.1} parent=1 // pred_fallthru
      _
    // Predicated region
    $region6: #{tpu_custom_call.1} parent=1 // pred_check
      _
    $region7: #{tpu_custom_call.1} parent=1 // pred_check_branch
      %20 = sbr.rel (0) target = $region9
    $region8: #{tpu_custom_call.1} parent=1 // pred_region
      %22 = dma.done [#allocation3], 256
    $region9: #{tpu_custom_call.1} parent=1 // pred_fallthru
      _
    %v23 = vld [vmem:[#allocation2] sm:$0xff]
    %v24 = vld [vmem:[#allocation2 + $0x8] sm:$0xff]
    %v25 = vand.u32 2147483647, %v23
    %v26 = vand.u32 2147483647, %v24
    %v27 = vsub.f32 0.0, %v25
    %v28 = vsub.f32 0.0, %v26
    %v29 = vmul.f32 %v27, 1.442695
    %v30 = vpow.pop %v29
    %v31 = vmul.f32 %v28, 1.442695
    %v32 = vpow.pop %v31
    %v33 = vmul.f32 %v30, 2.0
    %v34 = vmul.f32 %v32, 2.0
    %v35 = vmul.f32 %v30, %v30
    %v36 = vmul.f32 %v32, %v32
    %vm37 = vcmp.ge.f32.partialorder %v23, 0.0
    %vm38 = vcmp.ge.f32.partialorder %v24, 0.0
    %v39 = vadd.f32 %v33, 1.0
    %v40 = vadd.f32 %v34, 1.0
    %v41 = vadd.f32 %v35, %v33
    %v42 = vadd.f32 %v36, %v34
    %v43 = vsel %vm37, %v39, %v41
    %v44 = vsel %vm38, %v40, %v42
    %v45 = vmul.f32 %v35, 2.0
    %v46 = vmul.f32 %v36, 2.0
    %v47 = vsel %vm37, %v45, 2.0
    %v48 = vsel %vm38, %v46, 2.0
    %v49 = vadd.f32 %v43, %v47
    %v50 = vadd.f32 %v44, %v48
    %v51 = vrcp.pop %v49
    %v52 = vmul.f32 %v49, %v51
    %v53 = vsub.f32 1.0, %v52
    %v54 = vmul.f32 %v51, %v53
    %v55 = vadd.f32 %v51, %v54
    %vm56 = vweird.f32 %v49
    %vm57 = vweird.f32 %v51
    %vm58 = vmor %vm56, %vm57
    %v59 = vsel %vm58, %v51, %v55
    %v60 = vand.u32 2147483647, %v49
    %vm61 = vcmp.eq.f32.partialorder %v60, 8.507059e+37
    %v62 = vand.u32 %v49, 2147483648
    %v63 = vor.u32 1.1754944e-38, %v62
    %v64 = vsel %vm61, %v63, %v59
    %v65 = vmul.f32 %v43, %v64
    %v66 = vrcp.pop %v50
    %v67 = vmul.f32 %v50, %v66
    %v68 = vsub.f32 1.0, %v67
    %v69 = vmul.f32 %v66, %v68
    %v70 = vadd.f32 %v66, %v69
    %vm71 = vweird.f32 %v50
    %vm72 = vweird.f32 %v66
    %vm73 = vmor %vm71, %vm72
    %v74 = vsel %vm73, %v66, %v70
    %v75 = vand.u32 2147483647, %v50
    %vm76 = vcmp.eq.f32.partialorder %v75, 8.507059e+37
    %v77 = vand.u32 %v50, 2147483648
    %v78 = vor.u32 1.1754944e-38, %v77
    %v79 = vsel %vm76, %v78, %v74
    %v80 = vmul.f32 %v44, %v79
    %v81 = vmul.f32 %v23, %v65
    %v82 = vmul.f32 %v24, %v80
    %83 = vst [vmem:[#allocation5] sm:$0xff] %v81
    %84 = vst [vmem:[#allocation5 + $0x8] sm:$0xff] %v82
    // Predicated region
    $region10: #{tpu_custom_call.1} parent=1 // pred_check
      _
    $region11: #{tpu_custom_call.1} parent=1 // pred_check_branch
      %86 = sbr.rel (0) target = $region13
    $region12: #{tpu_custom_call.1} parent=1 // pred_region
      %88 = vsyncadd [#allocation4], 0
      %s90 = sshll.u32 [#allocation5], 4
      %s91 = int_to_ptr.vmem [resolvable:$true] %s90
      %s92 = sshll.u32 %s1, 4
      %s93 = int_to_ptr.hbm [resolvable:$true] %s92
      %95 = dma.vmem_to_hbm [thread:$0]  %s91, 256, %s93, [#allocation4]
    $region13: #{tpu_custom_call.1} parent=1 // pred_fallthru
      _
    // Predicated region
    $region14: #{tpu_custom_call.1} parent=1 // pred_check
      _
    $region15: #{tpu_custom_call.1} parent=1 // pred_check_branch
      %97 = sbr.rel (0) target = $region17
    $region16: #{tpu_custom_call.1} parent=1 // pred_region
      %99 = dma.done [#allocation4], 256
    $region17: #{tpu_custom_call.1} parent=1 // pred_fallthru
      _
    %100 = vsyncpa [#allocation3], 1
    %101 = vsyncpa [#allocation4], 1

</llo_original>
